<compile_context>
chip_gen: v7x
topology: tpu7x:2x2x1
jax: 0.10.0
libtpu: 0.0.40
codegen_flags: <defaults>
</compile_context>

<pallas_src>
import jax
import jax.numpy as jnp
from jax.experimental import pallas as pl
from jax.experimental.pallas import tpu as pltpu


def _upsample_kernel(x_ref, w_ref, shift_ref, o_ref):
    # x_ref:     (1, TH, W, Cin)       input rows (NHWC), compute dtype (bf16/f32)
    # w_ref:     (Cin, Cout)           1x1 conv weight with BN scale folded in
    # shift_ref: (1, Cout)             folded BN shift = beta - mean * scale (f32)
    # o_ref:     (1, 2*TH, W, 2*Cout)  lane-dense output; row-major identical to
    #                                  (1, 2*TH, 2*W, Cout)
    _, th2, W, c2 = o_ref.shape
    TH, Cout = th2 // 2, c2 // 2
    Cin = x_ref.shape[-1]

    # 1x1 conv (+ folded BN scale) == one MXU matmul with M = TH*W, f32 accumulate.
    x = x_ref[0].reshape(TH * W, Cin)
    y = jnp.dot(x, w_ref[...], preferred_element_type=jnp.float32)   # [TH*W, Cout]
    y = y + shift_ref[...]                                           # BN shift
    y = jnp.where(y > 0, y, 0.1 * y)                                 # LeakyReLU(0.1)
    y = y.astype(o_ref.dtype).reshape(TH, W, Cout)

    # Nearest x2 upsample: store the SAME vregs four times (two output rows for
    # H-duplication, two lane-halves for W-duplication). No broadcast value is
    # materialized, no sublane-padded temporaries are created.
    for h in range(TH):
        row = y[h]                                  # (W, Cout)
        o_ref[0, 2 * h,     :, :Cout] = row
        o_ref[0, 2 * h,     :, Cout:] = row
        o_ref[0, 2 * h + 1, :, :Cout] = row
        o_ref[0, 2 * h + 1, :, Cout:] = row


def _round_up(x, m):
    return ((x + m - 1) // m) * m


def _vmem_capacity_bytes():
    """Physical VMEM of the current TPU generation (fallback: v7x's 64 MiB)."""
    try:
        info = pltpu.get_tpu_info()
        cap = getattr(info, "vmem_capacity_bytes", None)
        if cap:
            return int(cap)
    except Exception:
        pass
    return 64 * 1024 * 1024


def _pick_tile_h(N, H, W, Cin, Cout, in_itemsize, out_itemsize, vmem_budget):
    """Pick TH (input rows per grid step), a divisor of H.

    Goals in order: fit double-buffered blocks in `vmem_budget`; keep the MXU
    M-dimension (TH*W) >= 256 (>=128 / >=64 as fallbacks); keep >=4 (or >=2)
    total grid steps so the pipeline overlaps and v7x can use both TensorCores.
    Never falls back to TH=1; awkward shapes (e.g. 13x13, N=1) get one big
    block rather than W-row matmuls.
    """
    def blk_bytes(th):
        in_b = 2 * th * _round_up(W, 8) * _round_up(Cin, 128) * in_itemsize
        out_b = 2 * (2 * th) * _round_up(W, 8) * _round_up(2 * Cout, 128) * out_itemsize
        w_b = _round_up(Cin, 8) * _round_up(Cout, 128) * in_itemsize
        inter = 2 * th * W * _round_up(Cout, 128) * 4          # f32 intermediates / slack
        return in_b + out_b + w_b + inter

    divisors = [d for d in range(1, H + 1) if H % d == 0]
    fitting = [d for d in divisors if blk_bytes(d) <= vmem_budget]
    if not fitting:
        fitting = [min(divisors)]

    def steps(th):
        return N * (H // th)

    for min_steps, min_m in ((4, 256), (4, 128), (2, 256), (2, 128), (2, 64)):
        cands = [d for d in fitting if steps(d) >= min_steps and d * W >= min_m]
        if cands:
            return max(cands)
    return max(fitting)


def upsample_forward_nhwc(x_nhwc, w_oihw, gamma, beta, running_mean, running_var,
                          eps=1e-5, compute_dtype=jnp.bfloat16,
                          out_dtype=jnp.float32):
    """Core NHWC path (no layout transposes): [N,H,W,Cin] -> [N,2H,2W,Cout]."""
    N, H, W, Cin = x_nhwc.shape
    Cout = w_oihw.shape[0]

    # Fold BatchNorm (inference, running stats) into the 1x1 conv weight.
    scale = (gamma / jnp.sqrt(running_var + eps)).astype(jnp.float32)          # [Cout]
    shift = (beta - running_mean * scale).astype(jnp.float32).reshape(1, Cout)
    w_mat = jnp.transpose(w_oihw[:, :, 0, 0], (1, 0)).astype(jnp.float32)      # [Cin,Cout]
    w_folded = (w_mat * scale[None, :]).astype(compute_dtype)                  # [Cin,Cout]

    x_in = x_nhwc.astype(compute_dtype)

    cap = _vmem_capacity_bytes()
    vmem_limit = int(cap * 0.75)          # ~96 MiB on v5e/v6e, ~48 MiB on v7x
    pick_budget = int(cap * 0.55)         # headroom for compiler scratch etc.

    in_itemsize = jnp.dtype(compute_dtype).itemsize
    out_itemsize = jnp.dtype(out_dtype).itemsize
    TH = _pick_tile_h(N, H, W, Cin, Cout, in_itemsize, out_itemsize, pick_budget)

    out4 = pl.pallas_call(
        _upsample_kernel,
        out_shape=jax.ShapeDtypeStruct((N, 2 * H, W, 2 * Cout), out_dtype),
        grid_spec=pltpu.PrefetchScalarGridSpec(
            num_scalar_prefetch=0,
            grid=(N, H // TH),
            in_specs=[
                pl.BlockSpec((1, TH, W, Cin), lambda n, hb: (n, hb, 0, 0)),
                pl.BlockSpec((Cin, Cout), lambda n, hb: (0, 0)),
                pl.BlockSpec((1, Cout), lambda n, hb: (0, 0)),
            ],
            out_specs=pl.BlockSpec((1, 2 * TH, W, 2 * Cout),
                                   lambda n, hb: (n, hb, 0, 0)),
        ),
        compiler_params=pltpu.CompilerParams(
            dimension_semantics=("parallel", "parallel"),
            vmem_limit_bytes=vmem_limit),
    )(x_in, w_folded, shift)

    # (N, 2H, W, 2*Cout) row-major == (N, 2H, 2W, Cout) row-major: free reshape.
    return out4.reshape(N, 2 * H, 2 * W, Cout)


def upsample_forward(x_nchw, w_oihw, gamma, beta, running_mean, running_var,
                     eps=1e-5, compute_dtype=jnp.bfloat16, out_dtype=jnp.float32):
    """PyTorch-interface wrapper: x [N,Cin,H,W] -> [N,Cout,2H,2W].

    The two transposes below exist only to honor the NCHW module interface;
    in an NHWC end-to-end pipeline call `upsample_forward_nhwc` directly and
    they disappear.
    """
    x_nhwc = jnp.transpose(x_nchw, (0, 2, 3, 1))
    out_nhwc = upsample_forward_nhwc(x_nhwc, w_oihw, gamma, beta, running_mean,
                                     running_var, eps=eps,
                                     compute_dtype=compute_dtype,
                                     out_dtype=out_dtype)
    return jnp.transpose(out_nhwc, (0, 3, 1, 2))


def _reference(x_nchw, w_oihw, gamma, beta, running_mean, running_var, eps=1e-5):
    # Pure-JAX f32 reference of the same forward pass (eval-mode BatchNorm).
    w_mat = w_oihw[:, :, 0, 0]                            # [Cout, Cin]
    y = jnp.einsum('nchw,oc->nohw', x_nchw, w_mat)        # 1x1 conv, no bias
    scale = gamma / jnp.sqrt(running_var + eps)
    shift = beta - running_mean * scale
    y = y * scale[None, :, None, None] + shift[None, :, None, None]
    y = jnp.where(y > 0, y, 0.1 * y)                      # LeakyReLU(0.1)
    y = jnp.repeat(jnp.repeat(y, 2, axis=2), 2, axis=3)   # nearest x2
    return y


if __name__ == "__main__":
    key = jax.random.PRNGKey(0)
    k_x, k_w, k_g, k_b, k_m, k_v = jax.random.split(key, 6)

    N, Cin, H, W = 2, 4, 16, 16
    Cout = 8

    x = jax.random.normal(k_x, (N, Cin, H, W), dtype=jnp.float32)
    w = jax.random.normal(k_w, (Cout, Cin, 1, 1), dtype=jnp.float32) * 0.1
    gamma = 1.0 + 0.1 * jax.random.normal(k_g, (Cout,), dtype=jnp.float32)
    beta = 0.1 * jax.random.normal(k_b, (Cout,), dtype=jnp.float32)
    running_mean = 0.1 * jax.random.normal(k_m, (Cout,), dtype=jnp.float32)
    running_var = jnp.abs(jax.random.normal(k_v, (Cout,), dtype=jnp.float32)) + 0.5

    ref = _reference(x, w, gamma, beta, running_mean, running_var)

    # Exact f32 path: validates the kernel math against the reference tightly.
    out_f32 = upsample_forward(x, w, gamma, beta, running_mean, running_var,
                               compute_dtype=jnp.float32)
    out_f32 = jax.block_until_ready(out_f32)
    assert out_f32.shape == (N, Cout, 2 * H, 2 * W), out_f32.shape
    assert jnp.allclose(out_f32, ref, atol=1e-4, rtol=1e-4), \
        float(jnp.max(jnp.abs(out_f32 - ref)))

    # Performance-default path: bf16 input/weight streams, f32 MXU accumulate.
    out_bf16 = upsample_forward(x, w, gamma, beta, running_mean, running_var)
    out_bf16 = jax.block_until_ready(out_bf16)
    assert out_bf16.shape == (N, Cout, 2 * H, 2 * W), out_bf16.shape
    assert jnp.allclose(out_bf16, ref, atol=2e-2, rtol=2e-2), \
        float(jnp.max(jnp.abs(out_bf16 - ref)))

    print("KERNEL_OK")
</pallas_src>

<mosaic_0001>
module attributes {stable_mosaic.version = 11 : i64} {
  func.func @_upsample_kernel(%arg0: i32, %arg1: i32, %arg2: memref<1x8x16x4xf32, #tpu.memory_space<vmem>>, %arg3: memref<4x8xf32, #tpu.memory_space<vmem>>, %arg4: memref<1x8xf32, #tpu.memory_space<vmem>>, %arg5: memref<1x16x16x16xf32, #tpu.memory_space<vmem>>) attributes {dimension_semantics = [#tpu.dimension_semantics<parallel>, #tpu.dimension_semantics<parallel>], iteration_bounds = array<i64: 2, 2>, scalar_prefetch = 0 : i64, scratch_operands = 0 : i64, tpu.core_type = #tpu.core_type<tc>, window_params = [{transform_indices = @transform_0, window_bounds = array<i64: 1, 8, 16, 4>}, {pipeline_mode = #tpu.pipeline_mode<synchronous>, transform_indices = @transform_1, window_bounds = array<i64: 4, 8>}, {pipeline_mode = #tpu.pipeline_mode<synchronous>, transform_indices = @transform_2, window_bounds = array<i64: 1, 8>}, {transform_indices = @transform_3, window_bounds = array<i64: 1, 16, 16, 16>}]} {
    %c0 = arith.constant 0 : index
    %c0_0 = arith.constant 0 : index
    %c0_1 = arith.constant 0 : index
    %c0_2 = arith.constant 0 : index
    %0 = vector.load %arg2[%c0, %c0_0, %c0_1, %c0_2] : memref<1x8x16x4xf32, #tpu.memory_space<vmem>>, vector<1x8x16x4xf32>
    %1 = vector.shape_cast %0 : vector<1x8x16x4xf32> to vector<8x16x4xf32>
    %2 = vector.shape_cast %1 : vector<8x16x4xf32> to vector<128x4xf32>
    %c0_3 = arith.constant 0 : index
    %c0_4 = arith.constant 0 : index
    %3 = vector.load %arg3[%c0_3, %c0_4] : memref<4x8xf32, #tpu.memory_space<vmem>>, vector<4x8xf32>
    %cst = arith.constant dense<0.000000e+00> : vector<128x8xf32>
    %4 = tpu.matmul %2, %3, %cst {dimension_numbers = #tpu.dot_dimension_numbers<[1], [0], [0], [1], [0, 0, 1, 1], [], []>} : vector<128x4xf32>, vector<4x8xf32>, vector<128x8xf32> -> vector<128x8xf32>
    %c0_5 = arith.constant 0 : index
    %c0_6 = arith.constant 0 : index
    %5 = vector.load %arg4[%c0_5, %c0_6] : memref<1x8xf32, #tpu.memory_space<vmem>>, vector<1x8xf32>
    %6 = vector.broadcast %5 : vector<1x8xf32> to vector<128x8xf32>
    %7 = arith.addf %4, %6 : vector<128x8xf32>
    %cst_7 = arith.constant 0.000000e+00 : f32
    %8 = vector.broadcast %cst_7 : f32 to vector<128x8xf32>
    %9 = arith.cmpf ogt, %7, %8 : vector<128x8xf32>
    %cst_8 = arith.constant 1.000000e-01 : f32
    %10 = vector.broadcast %cst_8 : f32 to vector<128x8xf32>
    %11 = arith.mulf %10, %7 : vector<128x8xf32>
    %12 = arith.select %9, %7, %11 : vector<128x8xi1>, vector<128x8xf32>
    %13 = vector.shape_cast %12 : vector<128x8xf32> to vector<8x16x8xf32>
    %14 = vector.extract_strided_slice %13 {offsets = [0, 0, 0], sizes = [1, 16, 8], strides = [1, 1, 1]} : vector<8x16x8xf32> to vector<1x16x8xf32>
    %15 = vector.shape_cast %14 : vector<1x16x8xf32> to vector<16x8xf32>
    %c0_9 = arith.constant 0 : index
    %c0_10 = arith.constant 0 : index
    %c0_11 = arith.constant 0 : index
    %c0_12 = arith.constant 0 : index
    %16 = vector.load %arg5[%c0_9, %c0_10, %c0_11, %c0_12] : memref<1x16x16x16xf32, #tpu.memory_space<vmem>>, vector<1x1x16x8xf32>
    %17 = vector.shape_cast %16 : vector<1x1x16x8xf32> to vector<16x8xf32>
    %18 = vector.shape_cast %15 : vector<16x8xf32> to vector<1x1x16x8xf32>
    tpu.vector_store %arg5[%c0_9, %c0_10, %c0_11, %c0_12], %18 {strides = array<i32>} : memref<1x16x16x16xf32, #tpu.memory_space<vmem>>, vector<1x1x16x8xf32>,
    %c0_13 = arith.constant 0 : index
    %c0_14 = arith.constant 0 : index
    %c0_15 = arith.constant 0 : index
    %c8 = arith.constant 8 : index
    %19 = vector.load %arg5[%c0_13, %c0_14, %c0_15, %c8] : memref<1x16x16x16xf32, #tpu.memory_space<vmem>>, vector<1x1x16x8xf32>
    %20 = vector.shape_cast %19 : vector<1x1x16x8xf32> to vector<16x8xf32>
    %21 = vector.shape_cast %15 : vector<16x8xf32> to vector<1x1x16x8xf32>
    tpu.vector_store %arg5[%c0_13, %c0_14, %c0_15, %c8], %21 {strides = array<i32>} : memref<1x16x16x16xf32, #tpu.memory_space<vmem>>, vector<1x1x16x8xf32>,
    %c0_16 = arith.constant 0 : index
    %c1 = arith.constant 1 : index
    %c0_17 = arith.constant 0 : index
    %c0_18 = arith.constant 0 : index
    %22 = vector.load %arg5[%c0_16, %c1, %c0_17, %c0_18] : memref<1x16x16x16xf32, #tpu.memory_space<vmem>>, vector<1x1x16x8xf32>
    %23 = vector.shape_cast %22 : vector<1x1x16x8xf32> to vector<16x8xf32>
    %24 = vector.shape_cast %15 : vector<16x8xf32> to vector<1x1x16x8xf32>
    tpu.vector_store %arg5[%c0_16, %c1, %c0_17, %c0_18], %24 {strides = array<i32>} : memref<1x16x16x16xf32, #tpu.memory_space<vmem>>, vector<1x1x16x8xf32>,
    %c0_19 = arith.constant 0 : index
    %c1_20 = arith.constant 1 : index
    %c0_21 = arith.constant 0 : index
    %c8_22 = arith.constant 8 : index
    %25 = vector.load %arg5[%c0_19, %c1_20, %c0_21, %c8_22] : memref<1x16x16x16xf32, #tpu.memory_space<vmem>>, vector<1x1x16x8xf32>
    %26 = vector.shape_cast %25 : vector<1x1x16x8xf32> to vector<16x8xf32>
    %27 = vector.shape_cast %15 : vector<16x8xf32> to vector<1x1x16x8xf32>
    tpu.vector_store %arg5[%c0_19, %c1_20, %c0_21, %c8_22], %27 {strides = array<i32>} : memref<1x16x16x16xf32, #tpu.memory_space<vmem>>, vector<1x1x16x8xf32>,
    %28 = vector.extract_strided_slice %13 {offsets = [1, 0, 0], sizes = [1, 16, 8], strides = [1, 1, 1]} : vector<8x16x8xf32> to vector<1x16x8xf32>
    %29 = vector.shape_cast %28 : vector<1x16x8xf32> to vector<16x8xf32>
    %c0_23 = arith.constant 0 : index
    %c2 = arith.constant 2 : index
    %c0_24 = arith.constant 0 : index
    %c0_25 = arith.constant 0 : index
    %30 = vector.load %arg5[%c0_23, %c2, %c0_24, %c0_25] : memref<1x16x16x16xf32, #tpu.memory_space<vmem>>, vector<1x1x16x8xf32>
    %31 = vector.shape_cast %30 : vector<1x1x16x8xf32> to vector<16x8xf32>
    %32 = vector.shape_cast %29 : vector<16x8xf32> to vector<1x1x16x8xf32>
    tpu.vector_store %arg5[%c0_23, %c2, %c0_24, %c0_25], %32 {strides = array<i32>} : memref<1x16x16x16xf32, #tpu.memory_space<vmem>>, vector<1x1x16x8xf32>,
    %c0_26 = arith.constant 0 : index
    %c2_27 = arith.constant 2 : index
    %c0_28 = arith.constant 0 : index
    %c8_29 = arith.constant 8 : index
    %33 = vector.load %arg5[%c0_26, %c2_27, %c0_28, %c8_29] : memref<1x16x16x16xf32, #tpu.memory_space<vmem>>, vector<1x1x16x8xf32>
    %34 = vector.shape_cast %33 : vector<1x1x16x8xf32> to vector<16x8xf32>
    %35 = vector.shape_cast %29 : vector<16x8xf32> to vector<1x1x16x8xf32>
    tpu.vector_store %arg5[%c0_26, %c2_27, %c0_28, %c8_29], %35 {strides = array<i32>} : memref<1x16x16x16xf32, #tpu.memory_space<vmem>>, vector<1x1x16x8xf32>,
    %c0_30 = arith.constant 0 : index
    %c3 = arith.constant 3 : index
    %c0_31 = arith.constant 0 : index
    %c0_32 = arith.constant 0 : index
    %36 = vector.load %arg5[%c0_30, %c3, %c0_31, %c0_32] : memref<1x16x16x16xf32, #tpu.memory_space<vmem>>, vector<1x1x16x8xf32>
    %37 = vector.shape_cast %36 : vector<1x1x16x8xf32> to vector<16x8xf32>
    %38 = vector.shape_cast %29 : vector<16x8xf32> to vector<1x1x16x8xf32>
    tpu.vector_store %arg5[%c0_30, %c3, %c0_31, %c0_32], %38 {strides = array<i32>} : memref<1x16x16x16xf32, #tpu.memory_space<vmem>>, vector<1x1x16x8xf32>,
    %c0_33 = arith.constant 0 : index
    %c3_34 = arith.constant 3 : index
    %c0_35 = arith.constant 0 : index
    %c8_36 = arith.constant 8 : index
    %39 = vector.load %arg5[%c0_33, %c3_34, %c0_35, %c8_36] : memref<1x16x16x16xf32, #tpu.memory_space<vmem>>, vector<1x1x16x8xf32>
    %40 = vector.shape_cast %39 : vector<1x1x16x8xf32> to vector<16x8xf32>
    %41 = vector.shape_cast %29 : vector<16x8xf32> to vector<1x1x16x8xf32>
    tpu.vector_store %arg5[%c0_33, %c3_34, %c0_35, %c8_36], %41 {strides = array<i32>} : memref<1x16x16x16xf32, #tpu.memory_space<vmem>>, vector<1x1x16x8xf32>,
    %42 = vector.extract_strided_slice %13 {offsets = [2, 0, 0], sizes = [1, 16, 8], strides = [1, 1, 1]} : vector<8x16x8xf32> to vector<1x16x8xf32>
    %43 = vector.shape_cast %42 : vector<1x16x8xf32> to vector<16x8xf32>
    %c0_37 = arith.constant 0 : index
    %c4 = arith.constant 4 : index
    %c0_38 = arith.constant 0 : index
    %c0_39 = arith.constant 0 : index
    %44 = vector.load %arg5[%c0_37, %c4, %c0_38, %c0_39] : memref<1x16x16x16xf32, #tpu.memory_space<vmem>>, vector<1x1x16x8xf32>
    %45 = vector.shape_cast %44 : vector<1x1x16x8xf32> to vector<16x8xf32>
    %46 = vector.shape_cast %43 : vector<16x8xf32> to vector<1x1x16x8xf32>
    tpu.vector_store %arg5[%c0_37, %c4, %c0_38, %c0_39], %46 {strides = array<i32>} : memref<1x16x16x16xf32, #tpu.memory_space<vmem>>, vector<1x1x16x8xf32>,
    %c0_40 = arith.constant 0 : index
    %c4_41 = arith.constant 4 : index
    %c0_42 = arith.constant 0 : index
    %c8_43 = arith.constant 8 : index
    %47 = vector.load %arg5[%c0_40, %c4_41, %c0_42, %c8_43] : memref<1x16x16x16xf32, #tpu.memory_space<vmem>>, vector<1x1x16x8xf32>
    %48 = vector.shape_cast %47 : vector<1x1x16x8xf32> to vector<16x8xf32>
    %49 = vector.shape_cast %43 : vector<16x8xf32> to vector<1x1x16x8xf32>
    tpu.vector_store %arg5[%c0_40, %c4_41, %c0_42, %c8_43], %49 {strides = array<i32>} : memref<1x16x16x16xf32, #tpu.memory_space<vmem>>, vector<1x1x16x8xf32>,
    %c0_44 = arith.constant 0 : index
    %c5 = arith.constant 5 : index
    %c0_45 = arith.constant 0 : index
    %c0_46 = arith.constant 0 : index
    %50 = vector.load %arg5[%c0_44, %c5, %c0_45, %c0_46] : memref<1x16x16x16xf32, #tpu.memory_space<vmem>>, vector<1x1x16x8xf32>
    %51 = vector.shape_cast %50 : vector<1x1x16x8xf32> to vector<16x8xf32>
    %52 = vector.shape_cast %43 : vector<16x8xf32> to vector<1x1x16x8xf32>
    tpu.vector_store %arg5[%c0_44, %c5, %c0_45, %c0_46], %52 {strides = array<i32>} : memref<1x16x16x16xf32, #tpu.memory_space<vmem>>, vector<1x1x16x8xf32>,
    %c0_47 = arith.constant 0 : index
    %c5_48 = arith.constant 5 : index
    %c0_49 = arith.constant 0 : index
    %c8_50 = arith.constant 8 : index
    %53 = vector.load %arg5[%c0_47, %c5_48, %c0_49, %c8_50] : memref<1x16x16x16xf32, #tpu.memory_space<vmem>>, vector<1x1x16x8xf32>
    %54 = vector.shape_cast %53 : vector<1x1x16x8xf32> to vector<16x8xf32>
    %55 = vector.shape_cast %43 : vector<16x8xf32> to vector<1x1x16x8xf32>
    tpu.vector_store %arg5[%c0_47, %c5_48, %c0_49, %c8_50], %55 {strides = array<i32>} : memref<1x16x16x16xf32, #tpu.memory_space<vmem>>, vector<1x1x16x8xf32>,
    %56 = vector.extract_strided_slice %13 {offsets = [3, 0, 0], sizes = [1, 16, 8], strides = [1, 1, 1]} : vector<8x16x8xf32> to vector<1x16x8xf32>
    %57 = vector.shape_cast %56 : vector<1x16x8xf32> to vector<16x8xf32>
    %c0_51 = arith.constant 0 : index
    %c6 = arith.constant 6 : index
    %c0_52 = arith.constant 0 : index
    %c0_53 = arith.constant 0 : index
    %58 = vector.load %arg5[%c0_51, %c6, %c0_52, %c0_53] : memref<1x16x16x16xf32, #tpu.memory_space<vmem>>, vector<1x1x16x8xf32>
    %59 = vector.shape_cast %58 : vector<1x1x16x8xf32> to vector<16x8xf32>
    %60 = vector.shape_cast %57 : vector<16x8xf32> to vector<1x1x16x8xf32>
    tpu.vector_store %arg5[%c0_51, %c6, %c0_52, %c0_53], %60 {strides = array<i32>} : memref<1x16x16x16xf32, #tpu.memory_space<vmem>>, vector<1x1x16x8xf32>,
    %c0_54 = arith.constant 0 : index
    %c6_55 = arith.constant 6 : index
    %c0_56 = arith.constant 0 : index
    %c8_57 = arith.constant 8 : index
    %61 = vector.load %arg5[%c0_54, %c6_55, %c0_56, %c8_57] : memref<1x16x16x16xf32, #tpu.memory_space<vmem>>, vector<1x1x16x8xf32>
    %62 = vector.shape_cast %61 : vector<1x1x16x8xf32> to vector<16x8xf32>
    %63 = vector.shape_cast %57 : vector<16x8xf32> to vector<1x1x16x8xf32>
    tpu.vector_store %arg5[%c0_54, %c6_55, %c0_56, %c8_57], %63 {strides = array<i32>} : memref<1x16x16x16xf32, #tpu.memory_space<vmem>>, vector<1x1x16x8xf32>,
    %c0_58 = arith.constant 0 : index
    %c7 = arith.constant 7 : index
    %c0_59 = arith.constant 0 : index
    %c0_60 = arith.constant 0 : index
    %64 = vector.load %arg5[%c0_58, %c7, %c0_59, %c0_60] : memref<1x16x16x16xf32, #tpu.memory_space<vmem>>, vector<1x1x16x8xf32>
    %65 = vector.shape_cast %64 : vector<1x1x16x8xf32> to vector<16x8xf32>
    %66 = vector.shape_cast %57 : vector<16x8xf32> to vector<1x1x16x8xf32>
    tpu.vector_store %arg5[%c0_58, %c7, %c0_59, %c0_60], %66 {strides = array<i32>} : memref<1x16x16x16xf32, #tpu.memory_space<vmem>>, vector<1x1x16x8xf32>,
    %c0_61 = arith.constant 0 : index
    %c7_62 = arith.constant 7 : index
    %c0_63 = arith.constant 0 : index
    %c8_64 = arith.constant 8 : index
    %67 = vector.load %arg5[%c0_61, %c7_62, %c0_63, %c8_64] : memref<1x16x16x16xf32, #tpu.memory_space<vmem>>, vector<1x1x16x8xf32>
    %68 = vector.shape_cast %67 : vector<1x1x16x8xf32> to vector<16x8xf32>
    %69 = vector.shape_cast %57 : vector<16x8xf32> to vector<1x1x16x8xf32>
    tpu.vector_store %arg5[%c0_61, %c7_62, %c0_63, %c8_64], %69 {strides = array<i32>} : memref<1x16x16x16xf32, #tpu.memory_space<vmem>>, vector<1x1x16x8xf32>,
    %70 = vector.extract_strided_slice %13 {offsets = [4, 0, 0], sizes = [1, 16, 8], strides = [1, 1, 1]} : vector<8x16x8xf32> to vector<1x16x8xf32>
    %71 = vector.shape_cast %70 : vector<1x16x8xf32> to vector<16x8xf32>
    %c0_65 = arith.constant 0 : index
    %c8_66 = arith.constant 8 : index
    %c0_67 = arith.constant 0 : index
    %c0_68 = arith.constant 0 : index
    %72 = vector.load %arg5[%c0_65, %c8_66, %c0_67, %c0_68] : memref<1x16x16x16xf32, #tpu.memory_space<vmem>>, vector<1x1x16x8xf32>
    %73 = vector.shape_cast %72 : vector<1x1x16x8xf32> to vector<16x8xf32>
    %74 = vector.shape_cast %71 : vector<16x8xf32> to vector<1x1x16x8xf32>
    tpu.vector_store %arg5[%c0_65, %c8_66, %c0_67, %c0_68], %74 {strides = array<i32>} : memref<1x16x16x16xf32, #tpu.memory_space<vmem>>, vector<1x1x16x8xf32>,
    %c0_69 = arith.constant 0 : index
    %c8_70 = arith.constant 8 : index
    %c0_71 = arith.constant 0 : index
    %c8_72 = arith.constant 8 : index
    %75 = vector.load %arg5[%c0_69, %c8_70, %c0_71, %c8_72] : memref<1x16x16x16xf32, #tpu.memory_space<vmem>>, vector<1x1x16x8xf32>
    %76 = vector.shape_cast %75 : vector<1x1x16x8xf32> to vector<16x8xf32>
    %77 = vector.shape_cast %71 : vector<16x8xf32> to vector<1x1x16x8xf32>
    tpu.vector_store %arg5[%c0_69, %c8_70, %c0_71, %c8_72], %77 {strides = array<i32>} : memref<1x16x16x16xf32, #tpu.memory_space<vmem>>, vector<1x1x16x8xf32>,
    %c0_73 = arith.constant 0 : index
    %c9 = arith.constant 9 : index
    %c0_74 = arith.constant 0 : index
    %c0_75 = arith.constant 0 : index
    %78 = vector.load %arg5[%c0_73, %c9, %c0_74, %c0_75] : memref<1x16x16x16xf32, #tpu.memory_space<vmem>>, vector<1x1x16x8xf32>
    %79 = vector.shape_cast %78 : vector<1x1x16x8xf32> to vector<16x8xf32>
    %80 = vector.shape_cast %71 : vector<16x8xf32> to vector<1x1x16x8xf32>
    tpu.vector_store %arg5[%c0_73, %c9, %c0_74, %c0_75], %80 {strides = array<i32>} : memref<1x16x16x16xf32, #tpu.memory_space<vmem>>, vector<1x1x16x8xf32>,
    %c0_76 = arith.constant 0 : index
    %c9_77 = arith.constant 9 : index
    %c0_78 = arith.constant 0 : index
    %c8_79 = arith.constant 8 : index
    %81 = vector.load %arg5[%c0_76, %c9_77, %c0_78, %c8_79] : memref<1x16x16x16xf32, #tpu.memory_space<vmem>>, vector<1x1x16x8xf32>
    %82 = vector.shape_cast %81 : vector<1x1x16x8xf32> to vector<16x8xf32>
    %83 = vector.shape_cast %71 : vector<16x8xf32> to vector<1x1x16x8xf32>
    tpu.vector_store %arg5[%c0_76, %c9_77, %c0_78, %c8_79], %83 {strides = array<i32>} : memref<1x16x16x16xf32, #tpu.memory_space<vmem>>, vector<1x1x16x8xf32>,
    %84 = vector.extract_strided_slice %13 {offsets = [5, 0, 0], sizes = [1, 16, 8], strides = [1, 1, 1]} : vector<8x16x8xf32> to vector<1x16x8xf32>
    %85 = vector.shape_cast %84 : vector<1x16x8xf32> to vector<16x8xf32>
    %c0_80 = arith.constant 0 : index
    %c10 = arith.constant 10 : index
    %c0_81 = arith.constant 0 : index
    %c0_82 = arith.constant 0 : index
    %86 = vector.load %arg5[%c0_80, %c10, %c0_81, %c0_82] : memref<1x16x16x16xf32, #tpu.memory_space<vmem>>, vector<1x1x16x8xf32>
    %87 = vector.shape_cast %86 : vector<1x1x16x8xf32> to vector<16x8xf32>
    %88 = vector.shape_cast %85 : vector<16x8xf32> to vector<1x1x16x8xf32>
    tpu.vector_store %arg5[%c0_80, %c10, %c0_81, %c0_82], %88 {strides = array<i32>} : memref<1x16x16x16xf32, #tpu.memory_space<vmem>>, vector<1x1x16x8xf32>,
    %c0_83 = arith.constant 0 : index
    %c10_84 = arith.constant 10 : index
    %c0_85 = arith.constant 0 : index
    %c8_86 = arith.constant 8 : index
    %89 = vector.load %arg5[%c0_83, %c10_84, %c0_85, %c8_86] : memref<1x16x16x16xf32, #tpu.memory_space<vmem>>, vector<1x1x16x8xf32>
    %90 = vector.shape_cast %89 : vector<1x1x16x8xf32> to vector<16x8xf32>
    %91 = vector.shape_cast %85 : vector<16x8xf32> to vector<1x1x16x8xf32>
    tpu.vector_store %arg5[%c0_83, %c10_84, %c0_85, %c8_86], %91 {strides = array<i32>} : memref<1x16x16x16xf32, #tpu.memory_space<vmem>>, vector<1x1x16x8xf32>,
    %c0_87 = arith.constant 0 : index
    %c11 = arith.constant 11 : index
    %c0_88 = arith.constant 0 : index
    %c0_89 = arith.constant 0 : index
    %92 = vector.load %arg5[%c0_87, %c11, %c0_88, %c0_89] : memref<1x16x16x16xf32, #tpu.memory_space<vmem>>, vector<1x1x16x8xf32>
    %93 = vector.shape_cast %92 : vector<1x1x16x8xf32> to vector<16x8xf32>
    %94 = vector.shape_cast %85 : vector<16x8xf32> to vector<1x1x16x8xf32>
    tpu.vector_store %arg5[%c0_87, %c11, %c0_88, %c0_89], %94 {strides = array<i32>} : memref<1x16x16x16xf32, #tpu.memory_space<vmem>>, vector<1x1x16x8xf32>,
    %c0_90 = arith.constant 0 : index
    %c11_91 = arith.constant 11 : index
    %c0_92 = arith.constant 0 : index
    %c8_93 = arith.constant 8 : index
    %95 = vector.load %arg5[%c0_90, %c11_91, %c0_92, %c8_93] : memref<1x16x16x16xf32, #tpu.memory_space<vmem>>, vector<1x1x16x8xf32>
    %96 = vector.shape_cast %95 : vector<1x1x16x8xf32> to vector<16x8xf32>
    %97 = vector.shape_cast %85 : vector<16x8xf32> to vector<1x1x16x8xf32>
    tpu.vector_store %arg5[%c0_90, %c11_91, %c0_92, %c8_93], %97 {strides = array<i32>} : memref<1x16x16x16xf32, #tpu.memory_space<vmem>>, vector<1x1x16x8xf32>,
    %98 = vector.extract_strided_slice %13 {offsets = [6, 0, 0], sizes = [1, 16, 8], strides = [1, 1, 1]} : vector<8x16x8xf32> to vector<1x16x8xf32>
    %99 = vector.shape_cast %98 : vector<1x16x8xf32> to vector<16x8xf32>
    %c0_94 = arith.constant 0 : index
    %c12 = arith.constant 12 : index
    %c0_95 = arith.constant 0 : index
    %c0_96 = arith.constant 0 : index
    %100 = vector.load %arg5[%c0_94, %c12, %c0_95, %c0_96] : memref<1x16x16x16xf32, #tpu.memory_space<vmem>>, vector<1x1x16x8xf32>
    %101 = vector.shape_cast %100 : vector<1x1x16x8xf32> to vector<16x8xf32>
    %102 = vector.shape_cast %99 : vector<16x8xf32> to vector<1x1x16x8xf32>
    tpu.vector_store %arg5[%c0_94, %c12, %c0_95, %c0_96], %102 {strides = array<i32>} : memref<1x16x16x16xf32, #tpu.memory_space<vmem>>, vector<1x1x16x8xf32>,
    %c0_97 = arith.constant 0 : index
    %c12_98 = arith.constant 12 : index
    %c0_99 = arith.constant 0 : index
    %c8_100 = arith.constant 8 : index
    %103 = vector.load %arg5[%c0_97, %c12_98, %c0_99, %c8_100] : memref<1x16x16x16xf32, #tpu.memory_space<vmem>>, vector<1x1x16x8xf32>
    %104 = vector.shape_cast %103 : vector<1x1x16x8xf32> to vector<16x8xf32>
    %105 = vector.shape_cast %99 : vector<16x8xf32> to vector<1x1x16x8xf32>
    tpu.vector_store %arg5[%c0_97, %c12_98, %c0_99, %c8_100], %105 {strides = array<i32>} : memref<1x16x16x16xf32, #tpu.memory_space<vmem>>, vector<1x1x16x8xf32>,
    %c0_101 = arith.constant 0 : index
    %c13 = arith.constant 13 : index
    %c0_102 = arith.constant 0 : index
    %c0_103 = arith.constant 0 : index
    %106 = vector.load %arg5[%c0_101, %c13, %c0_102, %c0_103] : memref<1x16x16x16xf32, #tpu.memory_space<vmem>>, vector<1x1x16x8xf32>
    %107 = vector.shape_cast %106 : vector<1x1x16x8xf32> to vector<16x8xf32>
    %108 = vector.shape_cast %99 : vector<16x8xf32> to vector<1x1x16x8xf32>
    tpu.vector_store %arg5[%c0_101, %c13, %c0_102, %c0_103], %108 {strides = array<i32>} : memref<1x16x16x16xf32, #tpu.memory_space<vmem>>, vector<1x1x16x8xf32>,
    %c0_104 = arith.constant 0 : index
    %c13_105 = arith.constant 13 : index
    %c0_106 = arith.constant 0 : index
    %c8_107 = arith.constant 8 : index
    %109 = vector.load %arg5[%c0_104, %c13_105, %c0_106, %c8_107] : memref<1x16x16x16xf32, #tpu.memory_space<vmem>>, vector<1x1x16x8xf32>
    %110 = vector.shape_cast %109 : vector<1x1x16x8xf32> to vector<16x8xf32>
    %111 = vector.shape_cast %99 : vector<16x8xf32> to vector<1x1x16x8xf32>
    tpu.vector_store %arg5[%c0_104, %c13_105, %c0_106, %c8_107], %111 {strides = array<i32>} : memref<1x16x16x16xf32, #tpu.memory_space<vmem>>, vector<1x1x16x8xf32>,
    %112 = vector.extract_strided_slice %13 {offsets = [7, 0, 0], sizes = [1, 16, 8], strides = [1, 1, 1]} : vector<8x16x8xf32> to vector<1x16x8xf32>
    %113 = vector.shape_cast %112 : vector<1x16x8xf32> to vector<16x8xf32>
    %c0_108 = arith.constant 0 : index
    %c14 = arith.constant 14 : index
    %c0_109 = arith.constant 0 : index
    %c0_110 = arith.constant 0 : index
    %114 = vector.load %arg5[%c0_108, %c14, %c0_109, %c0_110] : memref<1x16x16x16xf32, #tpu.memory_space<vmem>>, vector<1x1x16x8xf32>
    %115 = vector.shape_cast %114 : vector<1x1x16x8xf32> to vector<16x8xf32>
    %116 = vector.shape_cast %113 : vector<16x8xf32> to vector<1x1x16x8xf32>
    tpu.vector_store %arg5[%c0_108, %c14, %c0_109, %c0_110], %116 {strides = array<i32>} : memref<1x16x16x16xf32, #tpu.memory_space<vmem>>, vector<1x1x16x8xf32>,
    %c0_111 = arith.constant 0 : index
    %c14_112 = arith.constant 14 : index
    %c0_113 = arith.constant 0 : index
    %c8_114 = arith.constant 8 : index
    %117 = vector.load %arg5[%c0_111, %c14_112, %c0_113, %c8_114] : memref<1x16x16x16xf32, #tpu.memory_space<vmem>>, vector<1x1x16x8xf32>
    %118 = vector.shape_cast %117 : vector<1x1x16x8xf32> to vector<16x8xf32>
    %119 = vector.shape_cast %113 : vector<16x8xf32> to vector<1x1x16x8xf32>
    tpu.vector_store %arg5[%c0_111, %c14_112, %c0_113, %c8_114], %119 {strides = array<i32>} : memref<1x16x16x16xf32, #tpu.memory_space<vmem>>, vector<1x1x16x8xf32>,
    %c0_115 = arith.constant 0 : index
    %c15 = arith.constant 15 : index
    %c0_116 = arith.constant 0 : index
    %c0_117 = arith.constant 0 : index
    %120 = vector.load %arg5[%c0_115, %c15, %c0_116, %c0_117] : memref<1x16x16x16xf32, #tpu.memory_space<vmem>>, vector<1x1x16x8xf32>
    %121 = vector.shape_cast %120 : vector<1x1x16x8xf32> to vector<16x8xf32>
    %122 = vector.shape_cast %113 : vector<16x8xf32> to vector<1x1x16x8xf32>
    tpu.vector_store %arg5[%c0_115, %c15, %c0_116, %c0_117], %122 {strides = array<i32>} : memref<1x16x16x16xf32, #tpu.memory_space<vmem>>, vector<1x1x16x8xf32>,
    %c0_118 = arith.constant 0 : index
    %c15_119 = arith.constant 15 : index
    %c0_120 = arith.constant 0 : index
    %c8_121 = arith.constant 8 : index
    %123 = vector.load %arg5[%c0_118, %c15_119, %c0_120, %c8_121] : memref<1x16x16x16xf32, #tpu.memory_space<vmem>>, vector<1x1x16x8xf32>
    %124 = vector.shape_cast %123 : vector<1x1x16x8xf32> to vector<16x8xf32>
    %125 = vector.shape_cast %113 : vector<16x8xf32> to vector<1x1x16x8xf32>
    tpu.vector_store %arg5[%c0_118, %c15_119, %c0_120, %c8_121], %125 {strides = array<i32>} : memref<1x16x16x16xf32, #tpu.memory_space<vmem>>, vector<1x1x16x8xf32>,
    return
  }
  func.func @transform_0(%arg0: i32, %arg1: i32) -> (i32, i32, i32, i32) {
    %c0_i32 = arith.constant 0 : i32
    %c0_i32_0 = arith.constant 0 : i32
    %c0_i32_1 = arith.constant 0 : i32
    return %arg0, %arg1, %c0_i32, %c0_i32_0 : i32, i32, i32, i32
  }
  func.func @transform_1(%arg0: i32, %arg1: i32) -> (i32, i32) {
    %c0_i32 = arith.constant 0 : i32
    %c0_i32_0 = arith.constant 0 : i32
    %c0_i32_1 = arith.constant 0 : i32
    return %c0_i32, %c0_i32_0 : i32, i32
  }
  func.func @transform_2(%arg0: i32, %arg1: i32) -> (i32, i32) {
    %c0_i32 = arith.constant 0 : i32
    %c0_i32_0 = arith.constant 0 : i32
    %c0_i32_1 = arith.constant 0 : i32
    return %c0_i32, %c0_i32_0 : i32, i32
  }
  func.func @transform_3(%arg0: i32, %arg1: i32) -> (i32, i32, i32, i32) {
    %c0_i32 = arith.constant 0 : i32
    %c0_i32_0 = arith.constant 0 : i32
    %c0_i32_1 = arith.constant 0 : i32
    return %arg0, %arg1, %c0_i32, %c0_i32_0 : i32, i32, i32, i32
  }
}

</mosaic_0001>

<llo_original>
// kernel: tpu_custom_call.1
$region0: #{tpu_custom_call.1}
  #allocation0 [shape = 'u32[]', space=smem, size = 0x4, offset = 0x4, fixed_abs, tag = 'smem constant byte address 0x4 - core index']
  #allocation1 [shape = 'u32[144,128]{1,0:T(1,128)}', space=vmem, size = 0x12000, scoped, tag = 'internal scratch']
  %s0 = inlined_call_operand.vmem [shape: f32[2,16,16,4], index: 0, kind: input, shape index: {}]
  %s1 = inlined_call_operand.vmem [shape: f32[4,8], index: 1, kind: input, shape index: {}]
  %s2 = inlined_call_operand.vmem [shape: f32[1,8], index: 2, kind: input, shape index: {}]
  %s3 = inlined_call_operand.vmem [shape: f32[2,32,16,16], index: 3, kind: output, shape index: {}]
  %s4 = sld [smem:[#allocation0]]
  $region45: #{tpu_custom_call.1} parent=0
    _
  %s6 = ssub.s32 1, %s4
  %s7 = scalar_select 0, %s6, %s4
  loop: start=0, step=1, limit=6
  $region2: #{tpu_custom_call.1} parent=0 // loop_pre_header
    _
  $region3: #{tpu_custom_call.1} parent=0 // loop_header
    %s9 = sphi 0, %s13
    %p10 = scmp.ge.s32.totalorder %s9, 6
    %s16 = sphi 0, %s28
    %s17 = sphi 0, %s24
    %s18 = sphi 0, %s16
    %s19 = sphi 0, %s17
    %s20 = sphi 0, %s18
    %s21 = sphi 0, %s19
    %s33 = sphi 0, %s35
    %s36 = sphi 0, %s33
    %s37 = sphi 0, %s36
    %s53 = sphi 0, %s37
    %s57 = sphi 0, %s57
    %s59 = sphi 0, %s57
    %s60 = sphi 0, %s59
    %s74 = sphi 0, %s60
    %s78 = sphi 0, %s78
    %s80 = sphi 0, %s78
    %s81 = sphi 0, %s80
    %s95 = sphi 0, %s81
    %s103 = sphi 0, %s105
    %s106 = sphi 0, %s103
    %s107 = sphi 0, %s106
    %s123 = sphi 0, %s107
  $region4: #{tpu_custom_call.1} parent=0 // loop_header_branch
    %12 = sbr.rel (%p10) target = $region8
  $region5: #{tpu_custom_call.1} parent=0 // loop_body
    %s14 = ssub.s32 %s9, 1
    %s15 = ssub.s32 %s9, 2
    %s22 = sadd.s32 1, %s17
    %p23 = scmp.ge.s32.totalorder %s22, 2
    %s24 = scalar_select %p23, 0, %s22
    %s25 = sadd.s32 1, %s16
    %s26 = scalar_select %p23, %s25, %s16
    %p27 = scmp.ge.s32.totalorder %s26, 2
    %s28 = scalar_select %p27, 0, %s26
    %s29 = ssub.s32 %s16, %s28
    %s30 = ssub.s32 %s17, %s24
    %s31 = sor.u32 %s29, %s30
    %p32 = scmp.eq.s32.totalorder %s31, 0
    %s34 = sadd.s32 %s33, 1
    %s35 = scalar_select %p32, %s33, %s34
    %p38 = pneg %p32
    %p39 = scmp.eq.s32.totalorder %s9, 3
    %p40 = por %p38, %p39
    %p41 = scmp.ne.s32.totalorder %s33, %s36
    %p42 = scmp.eq.s32.totalorder %s9, 0
    %p43 = por %p41, %p42
    %p44 = scmp.ne.s32.totalorder %s33, %s36
    %p45 = scmp.eq.s32.totalorder %s14, 3
    %p46 = por %p44, %p45
    %p47 = scmp.ne.s32.totalorder %s36, %s37
    %p48 = scmp.eq.s32.totalorder %s14, 0
    %p49 = por %p47, %p48
    %p50 = scmp.ne.s32.totalorder %s36, %s37
    %p51 = scmp.eq.s32.totalorder %s15, 3
    %p52 = por %p50, %p51
    %p54 = scmp.ne.s32.totalorder %s37, %s53
    %p55 = scmp.eq.s32.totalorder %s15, 0
    %p56 = por %p54, %p55
    %s58 = sadd.s32 %s57, 1
    %p61 = scmp.eq.s32.totalorder %s9, 3
    %p62 = scmp.ne.s32.totalorder %s57, %s59
    %p63 = scmp.eq.s32.totalorder %s9, 0
    %p64 = por %p62, %p63
    %p65 = scmp.ne.s32.totalorder %s57, %s59
    %p66 = scmp.eq.s32.totalorder %s14, 3
    %p67 = por %p65, %p66
    %p68 = scmp.ne.s32.totalorder %s59, %s60
    %p69 = scmp.eq.s32.totalorder %s14, 0
    %p70 = por %p68, %p69
    %p71 = scmp.ne.s32.totalorder %s59, %s60
    %p72 = scmp.eq.s32.totalorder %s15, 3
    %p73 = por %p71, %p72
    %p75 = scmp.ne.s32.totalorder %s60, %s74
    %p76 = scmp.eq.s32.totalorder %s15, 0
    %p77 = por %p75, %p76
    %s79 = sadd.s32 %s78, 1
    %p82 = scmp.eq.s32.totalorder %s9, 3
    %p83 = scmp.ne.s32.totalorder %s78, %s80
    %p84 = scmp.eq.s32.totalorder %s9, 0
    %p85 = por %p83, %p84
    %p86 = scmp.ne.s32.totalorder %s78, %s80
    %p87 = scmp.eq.s32.totalorder %s14, 3
    %p88 = por %p86, %p87
    %p89 = scmp.ne.s32.totalorder %s80, %s81
    %p90 = scmp.eq.s32.totalorder %s14, 0
    %p91 = por %p89, %p90
    %p92 = scmp.ne.s32.totalorder %s80, %s81
    %p93 = scmp.eq.s32.totalorder %s15, 3
    %p94 = por %p92, %p93
    %p96 = scmp.ne.s32.totalorder %s81, %s95
    %p97 = scmp.eq.s32.totalorder %s15, 0
    %p98 = por %p96, %p97
    %s99 = ssub.s32 %s16, %s28
    %s100 = ssub.s32 %s17, %s24
    %s101 = sor.u32 %s99, %s100
    %p102 = scmp.eq.s32.totalorder %s101, 0
    %s104 = sadd.s32 %s103, 1
    %s105 = scalar_select %p102, %s103, %s104
    %p108 = pneg %p102
    %p109 = scmp.eq.s32.totalorder %s9, 3
    %p110 = por %p108, %p109
    %p111 = scmp.ne.s32.totalorder %s103, %s106
    %p112 = scmp.eq.s32.totalorder %s9, 0
    %p113 = por %p111, %p112
    %p114 = scmp.ne.s32.totalorder %s103, %s106
    %p115 = scmp.eq.s32.totalorder %s14, 3
    %p116 = por %p114, %p115
    %p117 = scmp.ne.s32.totalorder %s106, %s107
    %p118 = scmp.eq.s32.totalorder %s14, 0
    %p119 = por %p117, %p118
    %p120 = scmp.ne.s32.totalorder %s106, %s107
    %p121 = scmp.eq.s32.totalorder %s15, 3
    %p122 = por %p120, %p121
    %p124 = scmp.ne.s32.totalorder %s107, %s123
    %p125 = scmp.eq.s32.totalorder %s15, 0
    %p126 = por %p124, %p125
    %p127 = scmp.le.s32.totalorder 1, %s9
    %p128 = scmp.lt.s32.totalorder %s9, 5
    %p129 = pnand %p127, %p128
    %p130 = pneg %p129
    // Predicated region
    $region9: #{tpu_custom_call.1} parent=5 // pred_check
      _
    $region10: #{tpu_custom_call.1} parent=5 // pred_check_branch
      %132 = sbr.rel (%p129) target = $region12
    $region11: #{tpu_custom_call.1} parent=5 // pred_region
      %s133 = ssub.s32 %s9, 1
      // Predicated region
      $region13: #{tpu_custom_call.1} parent=11 // pred_check
        %p134 = pneg %p70
      $region14: #{tpu_custom_call.1} parent=11 // pred_check_branch
        %136 = sbr.rel (%p134) target = $region16
      $region15: #{tpu_custom_call.1} parent=11 // pred_region
        _
      $region16: #{tpu_custom_call.1} parent=11 // pred_fallthru
        _
      // Predicated region
      $region17: #{tpu_custom_call.1} parent=11 // pred_check
        %p137 = pneg %p91
      $region18: #{tpu_custom_call.1} parent=11 // pred_check_branch
        %139 = sbr.rel (%p137) target = $region20
      $region19: #{tpu_custom_call.1} parent=11 // pred_region
        _
      $region20: #{tpu_custom_call.1} parent=11 // pred_fallthru
        _
    $region12: #{tpu_custom_call.1} parent=5 // pred_fallthru
      _
    %p140 = scmp.lt.s32.totalorder %s9, 4
    // Predicated region
    $region21: #{tpu_custom_call.1} parent=5 // pred_check
      %p141 = pneg %p140
    $region22: #{tpu_custom_call.1} parent=5 // pred_check_branch
      %143 = sbr.rel (%p141) target = $region24
    $region23: #{tpu_custom_call.1} parent=5 // pred_region
      // Predicated region
      $region25: #{tpu_custom_call.1} parent=23 // pred_check
        %p144 = pneg %p43
      $region26: #{tpu_custom_call.1} parent=23 // pred_check_branch
        %146 = sbr.rel (%p144) target = $region28
      $region27: #{tpu_custom_call.1} parent=23 // pred_region
        %s147 = smul.u32 8, %s17
        %p148 = scmp.lt.s32.totalorder %s16, 1
        %s149 = scalar_select %p148, %s16, 1
        %p150 = scmp.lt.s32.totalorder %s147, 15
        %s151 = scalar_select %p150, %s147, 15
        %s152 = smul.addr %s151, 2
        %s153 = smul.addr %s149, 32
        %s154 = sadd.s32 %s152, %s153
        %s155 = smul.addr %s154, 8
        %s156 = scalar_lea.vmem %s0, %s155
        %s157 = smul.u32 8, %s17
      $region28: #{tpu_custom_call.1} parent=23 // pred_fallthru
        _
    $region24: #{tpu_custom_call.1} parent=5 // pred_fallthru
      _
    %p158 = scmp.le.s32.totalorder 1, %s9
    %p159 = scmp.lt.s32.totalorder %s9, 5
    %p160 = pnand %p158, %p159
    %p161 = pneg %p160
    // Predicated region
    $region29: #{tpu_custom_call.1} parent=5 // pred_check
      _
    $region30: #{tpu_custom_call.1} parent=5 // pred_check_branch
      %163 = sbr.rel (%p160) target = $region32
    $region31: #{tpu_custom_call.1} parent=5 // pred_region
      %s164 = ssub.s32 %s9, 1
      %s165 = smul.u32 8, %s19
      %p166 = scmp.lt.s32.totalorder %s18, 1
      %s167 = scalar_select %p166, %s18, 1
      %p168 = scmp.lt.s32.totalorder %s165, 15
      %s169 = scalar_select %p168, %s165, 15
      %s170 = smul.addr %s169, 2
      %s171 = smul.addr %s167, 32
      %s172 = sadd.s32 %s170, %s171
      %s173 = smul.addr %s172, 8
      %s174 = scalar_lea.vmem %s0, %s173
      %p175 = pneg %p49
      %p176 = pneg %p46
      %p177 = pneg %p70
      %p178 = pneg %p67
      %p179 = pneg %p91
      %p180 = pneg %p88
      %p181 = pneg %p119
      %p182 = pneg %p116
      %s183 = smul.u32 16, %s19
      %p184 = scmp.lt.s32.totalorder %s18, 1
      %s185 = scalar_select %p184, %s18, 1
      %p186 = scmp.lt.s32.totalorder %s183, 31
      %s187 = scalar_select %p186, %s183, 31
      %s188 = smul.addr %s187, 2
      %s189 = smul.addr %s185, 64
      %s190 = sadd.s32 %s188, %s189
      %s191 = smul.addr %s190, 8
      %s192 = scalar_lea.vmem %s3, %s191
      %s193 = smul.u32 8, %s19
      %p194 = scmp.lt.s32.totalorder %s18, 1
      %s195 = scalar_select %p194, %s18, 1
      %p196 = scmp.lt.s32.totalorder %s193, 15
      %s197 = scalar_select %p196, %s193, 15
      %s198 = smul.addr %s197, 2
      %s199 = smul.addr %s195, 32
      %s200 = sadd.s32 %s198, %s199
      %s201 = smul.addr %s200, 8
      %s202 = scalar_lea.vmem %s0, %s201
      %s203 = smul.u32 8, %s19
      %s204 = smul.u32 16, %s19
      %p205 = scmp.lt.s32.totalorder %s18, 1
      %s206 = scalar_select %p205, %s18, 1
      %p207 = scmp.lt.s32.totalorder %s204, 31
      %s208 = scalar_select %p207, %s204, 31
      %s209 = smul.addr %s208, 2
      %s210 = smul.addr %s206, 64
      %s211 = sadd.s32 %s209, %s210
      %s212 = smul.addr %s211, 8
      %s213 = scalar_lea.vmem %s3, %s212
      %s214 = smul.u32 16, %s19
      %v215 = vld [vmem:[%s202] sm:$0xff]
      %v216 = vld [vmem:[%s202 + $0x8] sm:$0xff]
      %v217 = vld [vmem:[%s202 + $0x10] sm:$0xff]
      %v218 = vld [vmem:[%s202 + $0x18] sm:$0xff]
      %v219 = vld [vmem:[%s202 + $0x20] sm:$0xff]
      %v220 = vld [vmem:[%s202 + $0x28] sm:$0xff]
      %v221 = vld [vmem:[%s202 + $0x30] sm:$0xff]
      %v222 = vld [vmem:[%s202 + $0x38] sm:$0xff]
      %v223 = vld [vmem:[%s202 + $0x40] sm:$0xff]
      %v224 = vld [vmem:[%s202 + $0x48] sm:$0xff]
      %v225 = vld [vmem:[%s202 + $0x50] sm:$0xff]
      %v226 = vld [vmem:[%s202 + $0x58] sm:$0xff]
      %v227 = vld [vmem:[%s202 + $0x60] sm:$0xff]
      %v228 = vld [vmem:[%s202 + $0x68] sm:$0xff]
      %v229 = vld [vmem:[%s202 + $0x70] sm:$0xff]
      %v230 = vld [vmem:[%s202 + $0x78] sm:$0xff]
      %v231 = vld [vmem:[%s1] sm:$0xf]
      %v232 = vld [vmem:[%s2] sm:$0x1]
      %v234 = vlaneseq
      %v235 = vshrl.u32 %v234, 7
      %v236 = vsub.s32 0, %v235
      %v237 = vrot.slane %v232, %v236
      %vm239 = vcmask 31744
      %v241 = vsel %vm239, %v215, 0
      %v244 = vsel %vm239, %v216, 0
      %v247 = vsel %vm239, %v217, 0
      %v250 = vsel %vm239, %v218, 0
      %v253 = vsel %vm239, %v219, 0
      %v256 = vsel %vm239, %v220, 0
      %v259 = vsel %vm239, %v221, 0
      %v262 = vsel %vm239, %v222, 0
      %v265 = vsel %vm239, %v223, 0
      %v268 = vsel %vm239, %v224, 0
      %v271 = vsel %vm239, %v225, 0
      %v274 = vsel %vm239, %v226, 0
      %v277 = vsel %vm239, %v227, 0
      %v280 = vsel %vm239, %v228, 0
      %v283 = vsel %vm239, %v229, 0
      %v286 = vsel %vm239, %v230, 0
      %vm288 = vcmask 1043456
      %v290 = vsel %vm288, %v231, 0
      %292 = vmatprep.subr.mxu0 0.0
      %293 = vmatpush1.msra.mxu0 %v290
      %294 = vmatprep.subr.mxu0 0.0
      %295 = vmatpush1.msra.mxu0 0.0
      %296 = vmatprep.subr.mxu0 0.0
      %297 = vmatpush1.msra.mxu0 0.0
      %298 = vmatprep.subr.mxu0 0.0
      %299 = vmatpush1.msra.mxu0 0.0
      %300 = vmatprep.subr.mxu0 0.0
      %301 = vmatpush1.msra.mxu0 0.0
      %302 = vmatprep.subr.mxu0 0.0
      %303 = vmatpush1.msra.mxu0 0.0
      %304 = vmatprep.subr.mxu0 0.0
      %305 = vmatpush1.msra.mxu0 0.0
      %306 = vmatprep.subr.mxu0 0.0
      %307 = vmatpush1.msra.mxu0 0.0
      %308 = vmatprep.subr.mxu0 0.0
      %309 = vmatpush1.msra.mxu0 0.0
      %310 = vmatprep.subr.mxu0 0.0
      %311 = vmatpush1.msra.mxu0 0.0
      %312 = vmatprep.subr.mxu0 0.0
      %313 = vmatpush1.msra.mxu0 0.0
      %314 = vmatprep.subr.mxu0 0.0
      %315 = vmatpush1.msra.mxu0 0.0
      %316 = vmatprep.subr.mxu0 0.0
      %317 = vmatpush1.msra.mxu0 0.0
      %318 = vmatprep.subr.mxu0 0.0
      %319 = vmatpush1.msra.mxu0 0.0
      %320 = vmatprep.subr.mxu0 0.0
      %321 = vmatpush1.msra.mxu0 0.0
      %322 = vmatprep.subr.mxu0 0.0
      %323 = vmatpush1.msra.mxu0 0.0
      %324 = vmatprep.subr.mxu0 0.0
      %325 = vmatpush1.msra.mxu0 0.0
      %326 = vmatprep.subr.mxu0 0.0
      %327 = vmatpush1.msra.mxu0 0.0
      %328 = vmatprep.subr.mxu0 0.0
      %329 = vmatpush1.msra.mxu0 0.0
      %330 = vmatprep.subr.mxu0 0.0
      %331 = vmatpush1.msra.mxu0 0.0
      %332 = vmatprep.subr.mxu0 0.0
      %333 = vmatpush1.msra.mxu0 0.0
      %334 = vmatprep.subr.mxu0 0.0
      %335 = vmatpush1.msra.mxu0 0.0
      %336 = vmatprep.subr.mxu0 0.0
      %337 = vmatpush1.msra.mxu0 0.0
      %338 = vmatprep.subr.mxu0 0.0
      %339 = vmatpush1.msra.mxu0 0.0
      %340 = vmatprep.subr.mxu0 0.0
      %341 = vmatpush1.msra.mxu0 0.0
      %342 = vmatprep.subr.mxu0 0.0
      %343 = vmatpush1.msra.mxu0 0.0
      %344 = vmatprep.subr.mxu0 0.0
      %345 = vmatpush1.msra.mxu0 0.0
      %346 = vmatprep.subr.mxu0 0.0
      %347 = vmatpush1.msra.mxu0 0.0
      %348 = vmatprep.subr.mxu0 0.0
      %349 = vmatpush1.msra.mxu0 0.0
      %350 = vmatprep.subr.mxu0 0.0
      %351 = vmatpush1.msra.mxu0 0.0
      %352 = vmatprep.subr.mxu0 0.0
      %353 = vmatpush1.msra.mxu0 0.0
      %354 = vmatprep.subr.mxu0 0.0
      %355 = vmatpush1.msra.mxu0 0.0
      %356 = vmatprep.mubr.f32.mxu0 0.0
      %357 = vmatmul.mubr.f32.gmra.mrb[0].mxu0 %v241
      %v358 = vpop.f32.mrb[0].mxu0
      %v359 = vadd.f32 %v237, %v358
      %v360 = vpop.f32.mrb[0].mxu0
      %361 = vmatprep.mubr.f32.mxu0 0.0
      %362 = vmatmul.mubr.f32.gmra.mrb[0].mxu0 %v244
      %v363 = vpop.f32.mrb[0].mxu0
      %v364 = vadd.f32 %v237, %v363
      %v365 = vpop.f32.mrb[0].mxu0
      %366 = vmatprep.mubr.f32.mxu0 0.0
      %367 = vmatmul.mubr.f32.gmra.mrb[0].mxu0 %v247
      %v368 = vpop.f32.mrb[0].mxu0
      %v369 = vadd.f32 %v237, %v368
      %v370 = vpop.f32.mrb[0].mxu0
      %371 = vmatprep.mubr.f32.mxu0 0.0
      %372 = vmatmul.mubr.f32.gmra.mrb[0].mxu0 %v250
      %v373 = vpop.f32.mrb[0].mxu0
      %v374 = vadd.f32 %v237, %v373
      %v375 = vpop.f32.mrb[0].mxu0
      %376 = vmatprep.mubr.f32.mxu0 0.0
      %377 = vmatmul.mubr.f32.gmra.mrb[0].mxu0 %v253
      %v378 = vpop.f32.mrb[0].mxu0
      %v379 = vadd.f32 %v237, %v378
      %v380 = vpop.f32.mrb[0].mxu0
      %381 = vmatprep.mubr.f32.mxu0 0.0
      %382 = vmatmul.mubr.f32.gmra.mrb[0].mxu0 %v256
      %v383 = vpop.f32.mrb[0].mxu0
      %v384 = vadd.f32 %v237, %v383
      %v385 = vpop.f32.mrb[0].mxu0
      %386 = vmatprep.mubr.f32.mxu0 0.0
      %387 = vmatmul.mubr.f32.gmra.mrb[0].mxu0 %v259
      %v388 = vpop.f32.mrb[0].mxu0
      %v389 = vadd.f32 %v237, %v388
      %v390 = vpop.f32.mrb[0].mxu0
      %391 = vmatprep.mubr.f32.mxu0 0.0
      %392 = vmatmul.mubr.f32.gmra.mrb[0].mxu0 %v262
      %v393 = vpop.f32.mrb[0].mxu0
      %v394 = vadd.f32 %v237, %v393
      %v395 = vpop.f32.mrb[0].mxu0
      %396 = vmatprep.mubr.f32.mxu0 0.0
      %397 = vmatmul.mubr.f32.gmra.mrb[0].mxu0 %v265
      %v398 = vpop.f32.mrb[0].mxu0
      %v399 = vadd.f32 %v237, %v398
      %v400 = vpop.f32.mrb[0].mxu0
      %401 = vmatprep.mubr.f32.mxu0 0.0
      %402 = vmatmul.mubr.f32.gmra.mrb[0].mxu0 %v268
      %v403 = vpop.f32.mrb[0].mxu0
      %v404 = vadd.f32 %v237, %v403
      %v405 = vpop.f32.mrb[0].mxu0
      %406 = vmatprep.mubr.f32.mxu0 0.0
      %407 = vmatmul.mubr.f32.gmra.mrb[0].mxu0 %v271
      %v408 = vpop.f32.mrb[0].mxu0
      %v409 = vadd.f32 %v237, %v408
      %v410 = vpop.f32.mrb[0].mxu0
      %411 = vmatprep.mubr.f32.mxu0 0.0
      %412 = vmatmul.mubr.f32.gmra.mrb[0].mxu0 %v274
      %v413 = vpop.f32.mrb[0].mxu0
      %v414 = vadd.f32 %v237, %v413
      %v415 = vpop.f32.mrb[0].mxu0
      %416 = vmatprep.mubr.f32.mxu0 0.0
      %417 = vmatmul.mubr.f32.gmra.mrb[0].mxu0 %v277
      %v418 = vpop.f32.mrb[0].mxu0
      %v419 = vadd.f32 %v237, %v418
      %v420 = vpop.f32.mrb[0].mxu0
      %421 = vmatprep.mubr.f32.mxu0 0.0
      %422 = vmatmul.mubr.f32.gmra.mrb[0].mxu0 %v280
      %v423 = vpop.f32.mrb[0].mxu0
      %v424 = vadd.f32 %v237, %v423
      %v425 = vpop.f32.mrb[0].mxu0
      %426 = vmatprep.mubr.f32.mxu0 0.0
      %427 = vmatmul.mubr.f32.gmra.mrb[0].mxu0 %v283
      %v428 = vpop.f32.mrb[0].mxu0
      %v429 = vadd.f32 %v237, %v428
      %v430 = vpop.f32.mrb[0].mxu0
      %431 = vmatprep.mubr.f32.mxu0 0.0
      %432 = vmatmul.mubr.f32.gmra.mrb[0].mxu0 %v286
      %v433 = vpop.f32.mrb[0].mxu0
      %v434 = vadd.f32 %v237, %v433
      %v435 = vpop.f32.mrb[0].mxu0
      %436 = vdwg.mxu0
      %vm437 = vcmp.gt.f32.partialorder %v359, 0.0
      %vm438 = vcmp.gt.f32.partialorder %v364, 0.0
      %vm439 = vcmp.gt.f32.partialorder %v369, 0.0
      %vm440 = vcmp.gt.f32.partialorder %v374, 0.0
      %vm441 = vcmp.gt.f32.partialorder %v379, 0.0
      %vm442 = vcmp.gt.f32.partialorder %v384, 0.0
      %vm443 = vcmp.gt.f32.partialorder %v389, 0.0
      %vm444 = vcmp.gt.f32.partialorder %v394, 0.0
      %vm445 = vcmp.gt.f32.partialorder %v399, 0.0
      %vm446 = vcmp.gt.f32.partialorder %v404, 0.0
      %vm447 = vcmp.gt.f32.partialorder %v409, 0.0
      %vm448 = vcmp.gt.f32.partialorder %v414, 0.0
      %vm449 = vcmp.gt.f32.partialorder %v419, 0.0
      %vm450 = vcmp.gt.f32.partialorder %v424, 0.0
      %vm451 = vcmp.gt.f32.partialorder %v429, 0.0
      %vm452 = vcmp.gt.f32.partialorder %v434, 0.0
      %v453 = vmul.f32 %v359, 0.1
      %v454 = vmul.f32 %v364, 0.1
      %v455 = vmul.f32 %v369, 0.1
      %v456 = vmul.f32 %v374, 0.1
      %v457 = vmul.f32 %v379, 0.1
      %v458 = vmul.f32 %v384, 0.1
      %v459 = vmul.f32 %v389, 0.1
      %v460 = vmul.f32 %v394, 0.1
      %v461 = vmul.f32 %v399, 0.1
      %v462 = vmul.f32 %v404, 0.1
      %v463 = vmul.f32 %v409, 0.1
      %v464 = vmul.f32 %v414, 0.1
      %v465 = vmul.f32 %v419, 0.1
      %v466 = vmul.f32 %v424, 0.1
      %v467 = vmul.f32 %v429, 0.1
      %v468 = vmul.f32 %v434, 0.1
      %v469 = vsel %vm437, %v359, %v453
      %v470 = vsel %vm438, %v364, %v454
      %v471 = vsel %vm439, %v369, %v455
      %v472 = vsel %vm440, %v374, %v456
      %v473 = vsel %vm441, %v379, %v457
      %v474 = vsel %vm442, %v384, %v458
      %v475 = vsel %vm443, %v389, %v459
      %v476 = vsel %vm444, %v394, %v460
      %v477 = vsel %vm445, %v399, %v461
      %v478 = vsel %vm446, %v404, %v462
      %v479 = vsel %vm447, %v409, %v463
      %v480 = vsel %vm448, %v414, %v464
      %v481 = vsel %vm449, %v419, %v465
      %v482 = vsel %vm450, %v424, %v466
      %v483 = vsel %vm451, %v429, %v467
      %v484 = vsel %vm452, %v434, %v468
      %vm485 = vcmask 64512
      %486 = vst.msk [vmem:[%s213] sm:$0xff] %vm485, %v469
      %487 = vst.msk [vmem:[%s213 + $0x8] sm:$0xff] %vm485, %v470
      %490 = vrot.lane.b32.xlu0 %v469, 8
      %v491 = vpop.permute.xlu0 %490
      %492 = vrot.lane.b32.xlu0 %v470, 8
      %v493 = vpop.permute.xlu0 %492
      %vm496 = vcmask 130112
      %497 = vst.msk [vmem:[%s213] sm:$0xff] %vm496, %v491
      %498 = vst.msk [vmem:[%s213 + $0x8] sm:$0xff] %vm496, %v493
      %s499 = scalar_lea.vmem %s213, 16
      %500 = vst.msk [vmem:[%s499] sm:$0xff] %vm485, %v469
      %501 = vst.msk [vmem:[%s499 + $0x8] sm:$0xff] %vm485, %v470
      %502 = vst.msk [vmem:[%s499] sm:$0xff] %vm496, %v491
      %503 = vst.msk [vmem:[%s499 + $0x8] sm:$0xff] %vm496, %v493
      %s504 = scalar_lea.vmem %s213, 32
      %505 = vst.msk [vmem:[%s504] sm:$0xff] %vm485, %v471
      %506 = vst.msk [vmem:[%s504 + $0x8] sm:$0xff] %vm485, %v472
      %509 = vrot.lane.b32.xlu0 %v471, 8
      %v510 = vpop.permute.xlu0 %509
      %511 = vrot.lane.b32.xlu0 %v472, 8
      %v512 = vpop.permute.xlu0 %511
      %515 = vst.msk [vmem:[%s504] sm:$0xff] %vm496, %v510
      %516 = vst.msk [vmem:[%s504 + $0x8] sm:$0xff] %vm496, %v512
      %s517 = scalar_lea.vmem %s213, 48
      %518 = vst.msk [vmem:[%s517] sm:$0xff] %vm485, %v471
      %519 = vst.msk [vmem:[%s517 + $0x8] sm:$0xff] %vm485, %v472
      %520 = vst.msk [vmem:[%s517] sm:$0xff] %vm496, %v510
      %521 = vst.msk [vmem:[%s517 + $0x8] sm:$0xff] %vm496, %v512
      %s522 = scalar_lea.vmem %s213, 64
      %523 = vst.msk [vmem:[%s522] sm:$0xff] %vm485, %v473
      %524 = vst.msk [vmem:[%s522 + $0x8] sm:$0xff] %vm485, %v474
      %527 = vrot.lane.b32.xlu0 %v473, 8
      %v528 = vpop.permute.xlu0 %527
      %529 = vrot.lane.b32.xlu0 %v474, 8
      %v530 = vpop.permute.xlu0 %529
      %533 = vst.msk [vmem:[%s522] sm:$0xff] %vm496, %v528
      %534 = vst.msk [vmem:[%s522 + $0x8] sm:$0xff] %vm496, %v530
      %s535 = scalar_lea.vmem %s213, 80
      %536 = vst.msk [vmem:[%s535] sm:$0xff] %vm485, %v473
      %537 = vst.msk [vmem:[%s535 + $0x8] sm:$0xff] %vm485, %v474
      %538 = vst.msk [vmem:[%s535] sm:$0xff] %vm496, %v528
      %539 = vst.msk [vmem:[%s535 + $0x8] sm:$0xff] %vm496, %v530
      %s540 = scalar_lea.vmem %s213, 96
      %541 = vst.msk [vmem:[%s540] sm:$0xff] %vm485, %v475
      %542 = vst.msk [vmem:[%s540 + $0x8] sm:$0xff] %vm485, %v476
      %545 = vrot.lane.b32.xlu0 %v475, 8
      %v546 = vpop.permute.xlu0 %545
      %547 = vrot.lane.b32.xlu0 %v476, 8
      %v548 = vpop.permute.xlu0 %547
      %551 = vst.msk [vmem:[%s540] sm:$0xff] %vm496, %v546
      %552 = vst.msk [vmem:[%s540 + $0x8] sm:$0xff] %vm496, %v548
      %s553 = scalar_lea.vmem %s213, 112
      %554 = vst.msk [vmem:[%s553] sm:$0xff] %vm485, %v475
      %555 = vst.msk [vmem:[%s553 + $0x8] sm:$0xff] %vm485, %v476
      %556 = vst.msk [vmem:[%s553] sm:$0xff] %vm496, %v546
      %557 = vst.msk [vmem:[%s553 + $0x8] sm:$0xff] %vm496, %v548
      %s558 = scalar_lea.vmem %s213, 128
      %559 = vst.msk [vmem:[%s558] sm:$0xff] %vm485, %v477
      %560 = vst.msk [vmem:[%s558 + $0x8] sm:$0xff] %vm485, %v478
      %563 = vrot.lane.b32.xlu0 %v477, 8
      %v564 = vpop.permute.xlu0 %563
      %565 = vrot.lane.b32.xlu0 %v478, 8
      %v566 = vpop.permute.xlu0 %565
      %569 = vst.msk [vmem:[%s558] sm:$0xff] %vm496, %v564
      %570 = vst.msk [vmem:[%s558 + $0x8] sm:$0xff] %vm496, %v566
      %s571 = scalar_lea.vmem %s213, 144
      %572 = vst.msk [vmem:[%s571] sm:$0xff] %vm485, %v477
      %573 = vst.msk [vmem:[%s571 + $0x8] sm:$0xff] %vm485, %v478
      %574 = vst.msk [vmem:[%s571] sm:$0xff] %vm496, %v564
      %575 = vst.msk [vmem:[%s571 + $0x8] sm:$0xff] %vm496, %v566
      %s576 = scalar_lea.vmem %s213, 160
      %577 = vst.msk [vmem:[%s576] sm:$0xff] %vm485, %v479
      %578 = vst.msk [vmem:[%s576 + $0x8] sm:$0xff] %vm485, %v480
      %581 = vrot.lane.b32.xlu0 %v479, 8
      %v582 = vpop.permute.xlu0 %581
      %583 = vrot.lane.b32.xlu0 %v480, 8
      %v584 = vpop.permute.xlu0 %583
      %587 = vst.msk [vmem:[%s576] sm:$0xff] %vm496, %v582
      %588 = vst.msk [vmem:[%s576 + $0x8] sm:$0xff] %vm496, %v584
      %s589 = scalar_lea.vmem %s213, 176
      %590 = vst.msk [vmem:[%s589] sm:$0xff] %vm485, %v479
      %591 = vst.msk [vmem:[%s589 + $0x8] sm:$0xff] %vm485, %v480
      %592 = vst.msk [vmem:[%s589] sm:$0xff] %vm496, %v582
      %593 = vst.msk [vmem:[%s589 + $0x8] sm:$0xff] %vm496, %v584
      %s594 = scalar_lea.vmem %s213, 192
      %595 = vst.msk [vmem:[%s594] sm:$0xff] %vm485, %v481
      %596 = vst.msk [vmem:[%s594 + $0x8] sm:$0xff] %vm485, %v482
      %599 = vrot.lane.b32.xlu0 %v481, 8
      %v600 = vpop.permute.xlu0 %599
      %601 = vrot.lane.b32.xlu0 %v482, 8
      %v602 = vpop.permute.xlu0 %601
      %605 = vst.msk [vmem:[%s594] sm:$0xff] %vm496, %v600
      %606 = vst.msk [vmem:[%s594 + $0x8] sm:$0xff] %vm496, %v602
      %s607 = scalar_lea.vmem %s213, 208
      %608 = vst.msk [vmem:[%s607] sm:$0xff] %vm485, %v481
      %609 = vst.msk [vmem:[%s607 + $0x8] sm:$0xff] %vm485, %v482
      %610 = vst.msk [vmem:[%s607] sm:$0xff] %vm496, %v600
      %611 = vst.msk [vmem:[%s607 + $0x8] sm:$0xff] %vm496, %v602
      %s612 = scalar_lea.vmem %s213, 224
      %613 = vst.msk [vmem:[%s612] sm:$0xff] %vm485, %v483
      %614 = vst.msk [vmem:[%s612 + $0x8] sm:$0xff] %vm485, %v484
      %617 = vrot.lane.b32.xlu0 %v483, 8
      %v618 = vpop.permute.xlu0 %617
      %619 = vrot.lane.b32.xlu0 %v484, 8
      %v620 = vpop.permute.xlu0 %619
      %623 = vst.msk [vmem:[%s612] sm:$0xff] %vm496, %v618
      %624 = vst.msk [vmem:[%s612 + $0x8] sm:$0xff] %vm496, %v620
      %s625 = scalar_lea.vmem %s213, 240
      %626 = vst.msk [vmem:[%s625] sm:$0xff] %vm485, %v483
      %627 = vst.msk [vmem:[%s625 + $0x8] sm:$0xff] %vm485, %v484
      %628 = vst.msk [vmem:[%s625] sm:$0xff] %vm496, %v618
      %629 = vst.msk [vmem:[%s625 + $0x8] sm:$0xff] %vm496, %v620
      %s630 = smul.u32 16, %s19
      %p631 = scmp.lt.s32.totalorder %s18, 1
      %s632 = scalar_select %p631, %s18, 1
      %p633 = scmp.lt.s32.totalorder %s630, 31
      %s634 = scalar_select %p633, %s630, 31
      %s635 = smul.addr %s634, 2
      %s636 = smul.addr %s632, 64
      %s637 = sadd.s32 %s635, %s636
      %s638 = smul.addr %s637, 8
      %s639 = scalar_lea.vmem %s3, %s638
      // Predicated region
      $region33: #{tpu_custom_call.1} parent=31 // pred_check
        %p640 = pneg %p116
      $region34: #{tpu_custom_call.1} parent=31 // pred_check_branch
        %642 = sbr.rel (%p640) target = $region36
      $region35: #{tpu_custom_call.1} parent=31 // pred_region
        %s643 = smul.u32 16, %s19
      $region36: #{tpu_custom_call.1} parent=31 // pred_fallthru
        _
    $region32: #{tpu_custom_call.1} parent=5 // pred_fallthru
      _
    %p644 = scmp.le.s32.totalorder 2, %s9
    // Predicated region
    $region37: #{tpu_custom_call.1} parent=5 // pred_check
      %p645 = pneg %p644
    $region38: #{tpu_custom_call.1} parent=5 // pred_check_branch
      %647 = sbr.rel (%p645) target = $region40
    $region39: #{tpu_custom_call.1} parent=5 // pred_region
      %s648 = ssub.s32 %s9, 2
      // Predicated region
      $region41: #{tpu_custom_call.1} parent=39 // pred_check
        %p649 = pneg %p122
      $region42: #{tpu_custom_call.1} parent=39 // pred_check_branch
        %651 = sbr.rel (%p649) target = $region44
      $region43: #{tpu_custom_call.1} parent=39 // pred_region
        %s652 = smul.u32 16, %s21
        %p653 = scmp.lt.s32.totalorder %s20, 1
        %s654 = scalar_select %p653, %s20, 1
        %p655 = scmp.lt.s32.totalorder %s652, 31
        %s656 = scalar_select %p655, %s652, 31
        %s657 = smul.addr %s656, 2
        %s658 = smul.addr %s654, 64
        %s659 = sadd.s32 %s657, %s658
        %s660 = smul.addr %s659, 8
        %s661 = scalar_lea.vmem %s3, %s660
      $region44: #{tpu_custom_call.1} parent=39 // pred_fallthru
        _
    $region40: #{tpu_custom_call.1} parent=5 // pred_fallthru
      _
  $region6: #{tpu_custom_call.1} parent=0 // loop_footer
    %s13 = sadd.s32 1, %s9
  $region7: #{tpu_custom_call.1} parent=0 // loop_footer_branch
    %8 = sbr.rel target = $region3
  $region8: #{tpu_custom_call.1} parent=0 // loop_exit
    _

</llo_original>
